<compile_context>
chip_gen: v5e
topology: v5e:2x2
jax: 0.10.0
libtpu: 0.0.40
codegen_flags: <defaults>
</compile_context>

<pallas_src>
import math

import jax
import jax.numpy as jnp
from jax.experimental import pallas as pl
from jax.experimental.pallas import tpu as pltpu


def _epsilon_fill_kernel(eps_ref, out_ref):
    # eps_ref: (1, 1) scalar in SMEM.  out_ref: (tbm, 128) lane-dense VMEM tile.
    # epsilon * ones_like(...)  ==  fill the tile with epsilon.
    out_ref[...] = jnp.full(out_ref.shape, eps_ref[0, 0], dtype=out_ref.dtype)


def epsilon_layer(x, epsilon, *, tbm=1024, min_pallas_elems=4096, use_pallas=None):
    """EpsilonLayer.forward: epsilon broadcast to x[:, 0:1]'s shape."""
    out_shape = (x.shape[0], 1) + tuple(x.shape[2:])
    out_dtype = jnp.result_type(epsilon.dtype, x.dtype)
    eps = jnp.asarray(epsilon, out_dtype).reshape(1, 1)
    n = math.prod(out_shape)

    if use_pallas is None:
        use_pallas = n >= min_pallas_elems
    if not use_pallas:
        # Small-output fast path: one XLA broadcast, no custom-call overhead.
        return jnp.full(out_shape, eps[0, 0], dtype=out_dtype)

    # ---- lane-dense Pallas path ------------------------------------------
    rows = pl.cdiv(n, 128)                                # rows of 128 lanes
    # Block rows: multiple of 8 (sublane rule), no larger than needed.
    tbm = max(8, (min(tbm, max(rows, 8)) // 8) * 8)
    if rows >= 16:
        # Keep >=2 grid steps so dimension_semantics=("parallel",) can shard
        # the writeback across v7x's two TensorCores (no-op on v5e/v6e).
        tbm = min(tbm, max(8, (pl.cdiv(rows, 2) // 8) * 8))
    rows_pad = pl.cdiv(rows, tbm) * tbm                   # whole blocks only
    grid = (rows_pad // tbm,)

    slab = pl.pallas_call(
        _epsilon_fill_kernel,
        out_shape=jax.ShapeDtypeStruct((rows_pad, 128), out_dtype),
        grid=grid,
        in_specs=[
            # epsilon: whole (1, 1) array resident in SMEM for every grid step.
            pl.BlockSpec((1, 1), lambda i: (0, 0),
                         memory_space=pltpu.MemorySpace.SMEM),
        ],
        out_specs=pl.BlockSpec((tbm, 128), lambda i: (i, 0)),
        compiler_params=pltpu.CompilerParams(
            dimension_semantics=("parallel",)),
    )(eps)

    # Slab -> first n elements -> module's output shape.
    # Metadata-only (no copy worth speaking of) when n == rows_pad * 128.
    return slab.reshape(rows_pad * 128)[:n].reshape(out_shape)


if __name__ == "__main__":
    key = jax.random.PRNGKey(0)
    kx, ke = jax.random.split(key)

    # Small shapes consistent with the module: (batch, features) activation
    # feeding the epsilon head (batch=2, channels=4, spatial=16 -> F=64).
    batch, channels, spatial = 2, 4, 16
    feat = channels * spatial
    x_small = jax.random.normal(kx, (batch, feat), jnp.float32)
    # matches nn.Parameter(torch.abs(torch.randn([1, 1]))) initialization
    epsilon = jnp.abs(jax.random.normal(ke, (1, 1), jnp.float32))

    ref_small = epsilon * jnp.ones_like(x_small[:, 0:1])

    # 1) Default path at tiny B (XLA fast path).
    y_small = jax.block_until_ready(epsilon_layer(x_small, epsilon))
    assert y_small.shape == (batch, 1)
    assert jnp.array_equal(y_small, ref_small)

    # 2) Pallas kernel forced at the same tiny shape (single (8,128) slab).
    y_small_pl = jax.block_until_ready(
        epsilon_layer(x_small, epsilon, use_pallas=True))
    assert y_small_pl.shape == (batch, 1)
    assert jnp.array_equal(y_small_pl, ref_small)

    # 3) Pallas lane-dense path at a larger batch (x values are never read,
    #    only its shape, so zeros are fine here).
    big_b = 8192
    x_big = jnp.zeros((big_b, feat), jnp.float32)
    y_big = jax.block_until_ready(epsilon_layer(x_big, epsilon))
    assert y_big.shape == (big_b, 1)
    assert jnp.array_equal(y_big, jnp.full((big_b, 1), epsilon[0, 0],
                                           dtype=y_big.dtype))

    print("KERNEL_OK")
</pallas_src>

<mosaic_0001>
module attributes {stable_mosaic.version = 11 : i64} {
  func.func @_epsilon_fill_kernel(%arg0: i32, %arg1: memref<1x1xf32, #tpu.memory_space<smem>>, %arg2: memref<8x128xf32, #tpu.memory_space<vmem>>) attributes {dimension_semantics = [#tpu.dimension_semantics<parallel>], iteration_bounds = array<i64: 1>, scalar_prefetch = 0 : i64, scratch_operands = 0 : i64, tpu.core_type = #tpu.core_type<tc>, window_params = [{transform_indices = @transform_0, window_bounds = array<i64: 1, 1>}, {transform_indices = @transform_1, window_bounds = array<i64: 8, 128>}]} {
    %c0 = arith.constant 0 : index
    %c0_0 = arith.constant 0 : index
    %0 = memref.load %arg1[%c0, %c0_0] : memref<1x1xf32, #tpu.memory_space<smem>>
    %1 = vector.broadcast %0 : f32 to vector<8x128xf32>
    %c0_1 = arith.constant 0 : index
    %c0_2 = arith.constant 0 : index
    %2 = vector.load %arg2[%c0_1, %c0_2] : memref<8x128xf32, #tpu.memory_space<vmem>>, vector<8x128xf32>
    tpu.vector_store %arg2[%c0_1, %c0_2], %1 {strides = array<i32>} : memref<8x128xf32, #tpu.memory_space<vmem>>, vector<8x128xf32>,
    return
  }
  func.func @transform_0(%arg0: i32) -> (i32, i32) {
    %c0_i32 = arith.constant 0 : i32
    %c0_i32_0 = arith.constant 0 : i32
    %c0_i32_1 = arith.constant 0 : i32
    return %c0_i32, %c0_i32_0 : i32, i32
  }
  func.func @transform_1(%arg0: i32) -> (i32, i32) {
    %c0_i32 = arith.constant 0 : i32
    %c0_i32_0 = arith.constant 0 : i32
    return %arg0, %c0_i32 : i32, i32
  }
}

</mosaic_0001>

<llo_original>
// kernel: tpu_custom_call.1
$region0: #{tpu_custom_call.1}
  #allocation0 [shape = 'u32[]', space=smem, size = 0x4, offset = 0x4, fixed_abs, tag = 'smem constant byte address 0x4 - core index']
  #allocation1 [shape = 'u32[72,128]{1,0:T(1,128)}', space=vmem, size = 0x9000, scoped, tag = 'internal scratch']
  #allocation2 [shape = 'f32[1,1]{1,0:T(1,128)S(6)}', space=smem, size = 0x200, scoped, tag = 'scoped memory for tpu_custom_call.1']
  %s0 = inlined_call_operand.<no memory space> [shape: f32[1,1], index: 0, kind: input, shape index: {}]
  %s1 = inlined_call_operand.hbm [shape: f32[8,128], index: 1, kind: output, shape index: {}]
  %s2 = sld [smem:[#allocation0]]
  $region14: #{tpu_custom_call.1} parent=0
    _
  %s4 = ssub.s32 1, %s2
  %s5 = scalar_select 0, %s4, %s2
  %6 = sst [smem:[#allocation2]] %s0
  $region1: #{tpu_custom_call.1} parent=0
    #allocation3 [shape = 'u8[4096]{0}', space=vmem, size = 0x1000, scoped, tag = 'output window, operand 0, single buffered']
    #allocation4 [shape = 's32[1]{0}', space=sflag, size = 0x4, scoped, tag = 'scoped memory for tpu_custom_call.1']
    %7 = vsyncpa [#allocation4], 0
    // Predicated region
    $region2: #{tpu_custom_call.1} parent=1 // pred_check
      _
    $region3: #{tpu_custom_call.1} parent=1 // pred_check_branch
      %9 = sbr.rel (0) target = $region5
    $region4: #{tpu_custom_call.1} parent=1 // pred_region
      _
    $region5: #{tpu_custom_call.1} parent=1 // pred_fallthru
      _
    %s10 = sld [smem:[#allocation2]]
    %v11 = vstv %s10
    %12 = vst [vmem:[#allocation3] sm:$0xff] %v11
    // Predicated region
    $region6: #{tpu_custom_call.1} parent=1 // pred_check
      _
    $region7: #{tpu_custom_call.1} parent=1 // pred_check_branch
      %14 = sbr.rel (0) target = $region9
    $region8: #{tpu_custom_call.1} parent=1 // pred_region
      %16 = vsyncadd [#allocation4], 0
      %s18 = sshll.u32 [#allocation3], 4
      %s19 = int_to_ptr.vmem [resolvable:$true] %s18
      %s20 = sshll.u32 %s1, 4
      %s21 = int_to_ptr.hbm [resolvable:$true] %s20
      %23 = dma.vmem_to_hbm [thread:$0]  %s19, 128, %s21, [#allocation4]
    $region9: #{tpu_custom_call.1} parent=1 // pred_fallthru
      _
    // Predicated region
    $region10: #{tpu_custom_call.1} parent=1 // pred_check
      _
    $region11: #{tpu_custom_call.1} parent=1 // pred_check_branch
      %25 = sbr.rel (0) target = $region13
    $region12: #{tpu_custom_call.1} parent=1 // pred_region
      %27 = dma.done [#allocation4], 128
    $region13: #{tpu_custom_call.1} parent=1 // pred_fallthru
      _
    %28 = vsyncpa [#allocation4], 1

</llo_original>
